<compile_context>
chip_gen: v6e
topology: v6e:2x2x1
jax: 0.10.0
libtpu: 0.0.40
codegen_flags: <defaults>
</compile_context>

<pallas_src>
import functools
import math

import jax
import jax.numpy as jnp
from jax.experimental import pallas as pl
from jax.experimental.pallas import tpu as pltpu

_DICE_EPS = 1.0        # smoothing constant for the soft-dice term
_LANES = 128
_SINGLE_PROGRAM_MAX_ROWS = 2048   # 2048*128*4 B = 1 MiB per input slab
_DEFAULT_TILE_ROWS = 1024         # 512 KiB per input tile per buffer


def _elementwise_terms(x, y):
    """Shared per-element math for both losses.

    A single exp(-|x|) feeds both the stable-BCE softplus term and the
    sigmoid; the sigmoid's divide is an approximate EUP reciprocal.
    Returns (bce_elem, p*y, p+y).
    """
    e = jnp.exp(-jnp.abs(x))                                   # 1 EUP exp/elem
    bce_elem = jnp.maximum(x, 0.0) - x * y + jnp.log1p(e)
    p = jnp.where(x >= 0.0, 1.0, e) * pl.reciprocal(1.0 + e, approx=True)
    return bce_elem, p * y, p + y


# ---------------------------------------------------------------------------
# Path 1: tiny inputs — single program, everything resident in VMEM.
# ---------------------------------------------------------------------------
def _combined_loss_kernel(pred_ref, mask_ref, out_ref, *, inv_n):
    x = pred_ref[...].astype(jnp.float32)   # logits
    y = mask_ref[...].astype(jnp.float32)   # targets in [0, 1]

    bce_elem, inter_elem, den_elem = _elementwise_terms(x, y)

    # 3 full cross-lane reductions (was 4).
    bce = jnp.sum(bce_elem) * inv_n
    inter = jnp.sum(inter_elem)
    den = jnp.sum(den_elem)

    dice = 1.0 - (2.0 * inter + _DICE_EPS) / (den + _DICE_EPS)
    out_ref[0, 0] = bce + dice              # CombinedLoss: sum of the losses


def _single_program_call(pred2d, mask2d, inv_n):
    rows, lanes = pred2d.shape
    total = rows * lanes
    cost = pl.CostEstimate(
        flops=12 * total,            # elementwise adds/muls/selects + reduces
        transcendentals=2 * total,   # one exp + one approx reciprocal / elem
        bytes_accessed=2 * total * 4 + 4,
    )
    out = pl.pallas_call(
        functools.partial(_combined_loss_kernel, inv_n=inv_n),
        out_shape=jax.ShapeDtypeStruct((1, 1), jnp.float32),
        in_specs=[
            pl.BlockSpec(memory_space=pltpu.VMEM),
            pl.BlockSpec(memory_space=pltpu.VMEM),
        ],
        out_specs=pl.BlockSpec(memory_space=pltpu.SMEM),
        cost_estimate=cost,
    )(pred2d, mask2d)
    return out[0, 0]


# ---------------------------------------------------------------------------
# Path 2: large inputs — 1-D grid over rows, accumulate-then-finalize.
# ---------------------------------------------------------------------------
def _combined_loss_tiled_kernel(pred_ref, mask_ref, out_ref,
                                acc_bce, acc_inter, acc_den, *, inv_n):
    step = pl.program_id(0)

    @pl.when(step == 0)
    def _init():
        acc_bce[...] = jnp.zeros_like(acc_bce)
        acc_inter[...] = jnp.zeros_like(acc_inter)
        acc_den[...] = jnp.zeros_like(acc_den)

    x = pred_ref[...].astype(jnp.float32)
    y = mask_ref[...].astype(jnp.float32)
    bce_elem, inter_elem, den_elem = _elementwise_terms(x, y)

    # Per-tile accumulation is pure VPU work (vreg-shaped elementwise adds);
    # the XLU cross-lane reductions happen exactly once, in the finalize step.
    acc_bce[...] += bce_elem
    acc_inter[...] += inter_elem
    acc_den[...] += den_elem

    @pl.when(step == pl.num_programs(0) - 1)
    def _finalize():
        bce = jnp.sum(acc_bce[...]) * inv_n
        inter = jnp.sum(acc_inter[...])
        den = jnp.sum(acc_den[...])
        dice = 1.0 - (2.0 * inter + _DICE_EPS) / (den + _DICE_EPS)
        out_ref[0, 0] = bce + dice


def _tiled_call(pred2d, mask2d, inv_n, tile_rows):
    rows, lanes = pred2d.shape
    num_tiles = rows // tile_rows
    out = pl.pallas_call(
        functools.partial(_combined_loss_tiled_kernel, inv_n=inv_n),
        out_shape=jax.ShapeDtypeStruct((1, 1), jnp.float32),
        grid_spec=pltpu.PrefetchScalarGridSpec(
            num_scalar_prefetch=0,
            grid=(num_tiles,),
            in_specs=[
                pl.BlockSpec((tile_rows, lanes), lambda i: (i, 0)),
                pl.BlockSpec((tile_rows, lanes), lambda i: (i, 0)),
            ],
            # Scalar output stays resident across the whole (reduction) grid.
            out_specs=pl.BlockSpec((1, 1), lambda i: (0, 0),
                                   memory_space=pltpu.SMEM),
            scratch_shapes=[
                pltpu.VMEM((tile_rows, lanes), jnp.float32),
                pltpu.VMEM((tile_rows, lanes), jnp.float32),
                pltpu.VMEM((tile_rows, lanes), jnp.float32),
            ],
        ),
        compiler_params=pltpu.CompilerParams(
            dimension_semantics=("arbitrary",),   # reduction axis
        ),
    )(pred2d, mask2d)
    return out[0, 0]


# ---------------------------------------------------------------------------
# Wrapper
# ---------------------------------------------------------------------------
def _largest_tile_rows(rows, max_tile_rows):
    for t in range(min(max_tile_rows, rows), 7, -1):
        if t % 8 == 0 and rows % t == 0:
            return t
    return None


def combined_loss(pred, mask, *, max_tile_rows=_DEFAULT_TILE_ROWS):
    """Fused BCEWithLogits(mean) + SoftDice(eps=1) loss. Returns a scalar."""
    assert pred.shape == mask.shape
    total = math.prod(pred.shape)
    assert total % _LANES == 0, "total element count must be a multiple of 128"
    rows = total // _LANES

    pred2d = pred.reshape(rows, _LANES).astype(jnp.float32)
    mask2d = mask.reshape(rows, _LANES).astype(jnp.float32)
    inv_n = 1.0 / float(total)

    if rows <= _SINGLE_PROGRAM_MAX_ROWS:
        # Launch/DMA-overhead bound at this size: no grid machinery.
        return _single_program_call(pred2d, mask2d, inv_n)

    tile_rows = _largest_tile_rows(rows, max_tile_rows)
    if tile_rows is None:
        # TODO(synk): ragged row counts need a masked tail tile; fall back to
        # the single-program whole-slab path for now.
        return _single_program_call(pred2d, mask2d, inv_n)
    return _tiled_call(pred2d, mask2d, inv_n, tile_rows)


# ---------------------------------------------------------------------------
# Pure-JAX reference (mirrors the PyTorch module semantics)
# ---------------------------------------------------------------------------
def _reference_combined_loss(pred, mask):
    x = pred.astype(jnp.float32)
    y = mask.astype(jnp.float32)
    bce = jnp.mean(jnp.maximum(x, 0.0) - x * y + jnp.log1p(jnp.exp(-jnp.abs(x))))
    p = jax.nn.sigmoid(x)
    dice = 1.0 - (2.0 * jnp.sum(p * y) + _DICE_EPS) / (
        jnp.sum(p) + jnp.sum(y) + _DICE_EPS
    )
    return bce + dice


if __name__ == "__main__":
    key = jax.random.PRNGKey(0)
    k1, k2, k3, k4 = jax.random.split(key, 4)

    # pred: raw logits, mask: binary targets — NCHW as in PyTorch.
    pred = jax.random.normal(k1, (2, 4, 16, 16), dtype=jnp.float32)
    mask = (jax.random.uniform(k2, (2, 4, 16, 16)) > 0.5).astype(jnp.float32)

    loss = combined_loss(pred, mask)
    jax.block_until_ready(loss)
    ref = _reference_combined_loss(pred, mask)
    # Tolerance accounts for the EUP approximate reciprocal in the sigmoid.
    assert jnp.allclose(loss, ref, rtol=2e-3, atol=2e-3), (loss, ref)

    # Also exercise the tiled accumulate/finalize path (the one that scales
    # to real segmentation resolutions) on a slightly larger map.
    pred_big = jax.random.normal(k3, (2, 4, 64, 64), dtype=jnp.float32)
    mask_big = (jax.random.uniform(k4, (2, 4, 64, 64)) > 0.5).astype(jnp.float32)
    rows_big = pred_big.size // _LANES
    loss_big = _tiled_call(
        pred_big.reshape(rows_big, _LANES),
        mask_big.reshape(rows_big, _LANES),
        1.0 / float(pred_big.size),
        tile_rows=64,
    )
    jax.block_until_ready(loss_big)
    ref_big = _reference_combined_loss(pred_big, mask_big)
    assert jnp.allclose(loss_big, ref_big, rtol=2e-3, atol=2e-3), (loss_big, ref_big)

    print("KERNEL_OK")
</pallas_src>

<mosaic_0001>
module attributes {stable_mosaic.version = 11 : i64} {
  func.func @_combined_loss_kernel(%arg0: memref<16x128xf32, #tpu.memory_space<vmem>>, %arg1: memref<16x128xf32, #tpu.memory_space<vmem>>, %arg2: memref<1x1xf32, #tpu.memory_space<smem>>) attributes {dimension_semantics = [], scalar_prefetch = 0 : i64, scratch_operands = 0 : i64, tpu.core_type = #tpu.core_type<tc>} {
    %c0 = arith.constant 0 : index
    %c0_0 = arith.constant 0 : index
    %0 = vector.load %arg0[%c0, %c0_0] : memref<16x128xf32, #tpu.memory_space<vmem>>, vector<16x128xf32>
    %c0_1 = arith.constant 0 : index
    %c0_2 = arith.constant 0 : index
    %1 = vector.load %arg1[%c0_1, %c0_2] : memref<16x128xf32, #tpu.memory_space<vmem>>, vector<16x128xf32>
    %2 = math.absf %0 : vector<16x128xf32>
    %cst = arith.constant 0.000000e+00 : f32
    %3 = vector.broadcast %cst : f32 to vector<16x128xf32>
    %4 = arith.subf %3, %2 : vector<16x128xf32>
    %5 = math.exp %4 : vector<16x128xf32>
    %cst_3 = arith.constant 0.000000e+00 : f32
    %6 = vector.broadcast %cst_3 : f32 to vector<16x128xf32>
    %7 = arith.maximumf %0, %6 : vector<16x128xf32>
    %8 = arith.mulf %0, %1 : vector<16x128xf32>
    %9 = arith.subf %7, %8 : vector<16x128xf32>
    %10 = math.log1p %5 : vector<16x128xf32>
    %11 = arith.addf %9, %10 : vector<16x128xf32>
    %cst_4 = arith.constant 0.000000e+00 : f32
    %12 = vector.broadcast %cst_4 : f32 to vector<16x128xf32>
    %13 = arith.cmpf oge, %0, %12 : vector<16x128xf32>
    %cst_5 = arith.constant 1.000000e+00 : f32
    %14 = vector.broadcast %cst_5 : f32 to vector<16x128xf32>
    %15 = arith.select %13, %14, %5 : vector<16x128xi1>, vector<16x128xf32>
    %cst_6 = arith.constant 1.000000e+00 : f32
    %16 = vector.broadcast %cst_6 : f32 to vector<16x128xf32>
    %17 = arith.addf %16, %5 : vector<16x128xf32>
    %18 = tpu.reciprocal %17 {approx = true} : vector<16x128xf32> -> vector<16x128xf32>
    %19 = arith.mulf %15, %18 : vector<16x128xf32>
    %20 = arith.mulf %19, %1 : vector<16x128xf32>
    %21 = arith.addf %19, %1 : vector<16x128xf32>
    %22 = vector.shape_cast %11 : vector<16x128xf32> to vector<1x16x128xf32>
    %cst_7 = arith.constant dense<0.000000e+00> : vector<1xf32>
    %23 = vector.multi_reduction <add>, %22, %cst_7 [1, 2] : vector<1x16x128xf32> to vector<1xf32>
    %24 = vector.shape_cast %23 : vector<1xf32> to vector<1x1x1xf32>
    %25 = vector.extract %24[0, 0, 0] : f32 from vector<1x1x1xf32>
    %cst_8 = arith.constant 4.8828125E-4 : f32
    %26 = arith.mulf %25, %cst_8 : f32
    %27 = vector.shape_cast %20 : vector<16x128xf32> to vector<1x16x128xf32>
    %cst_9 = arith.constant dense<0.000000e+00> : vector<1xf32>
    %28 = vector.multi_reduction <add>, %27, %cst_9 [1, 2] : vector<1x16x128xf32> to vector<1xf32>
    %29 = vector.shape_cast %28 : vector<1xf32> to vector<1x1x1xf32>
    %30 = vector.extract %29[0, 0, 0] : f32 from vector<1x1x1xf32>
    %31 = vector.shape_cast %21 : vector<16x128xf32> to vector<1x16x128xf32>
    %cst_10 = arith.constant dense<0.000000e+00> : vector<1xf32>
    %32 = vector.multi_reduction <add>, %31, %cst_10 [1, 2] : vector<1x16x128xf32> to vector<1xf32>
    %33 = vector.shape_cast %32 : vector<1xf32> to vector<1x1x1xf32>
    %34 = vector.extract %33[0, 0, 0] : f32 from vector<1x1x1xf32>
    %cst_11 = arith.constant 2.000000e+00 : f32
    %35 = arith.mulf %cst_11, %30 : f32
    %cst_12 = arith.constant 1.000000e+00 : f32
    %36 = arith.addf %35, %cst_12 : f32
    %cst_13 = arith.constant 1.000000e+00 : f32
    %37 = arith.addf %34, %cst_13 : f32
    %38 = arith.divf %36, %37 : f32
    %cst_14 = arith.constant 1.000000e+00 : f32
    %39 = arith.subf %cst_14, %38 : f32
    %40 = arith.addf %26, %39 : f32
    %c0_15 = arith.constant 0 : index
    %c0_16 = arith.constant 0 : index
    %41 = memref.load %arg2[%c0_15, %c0_16] : memref<1x1xf32, #tpu.memory_space<smem>>
    memref.store %40, %arg2[%c0_15, %c0_16] : memref<1x1xf32, #tpu.memory_space<smem>>
    return
  }
}

</mosaic_0001>

<llo_original>
// kernel: tpu_custom_call.1
$region0: #{tpu_custom_call.1}
  #allocation0 [shape = 'u32[]', space=smem, size = 0x4, offset = 0x4, fixed_abs, tag = 'smem constant byte address 0x4 - core index']
  #allocation1 [shape = 'u32[144,128]{1,0:T(1,128)}', space=vmem, size = 0x12000, scoped, tag = 'internal scratch']
  %s0 = inlined_call_operand.hbm [shape: f32[16,128], index: 0, kind: input, shape index: {}]
  %s1 = inlined_call_operand.hbm [shape: f32[16,128], index: 1, kind: input, shape index: {}]
  %s2 = inlined_call_operand.hbm [shape: f32[1,1], index: 2, kind: output, shape index: {}]
  %s3 = sld [smem:[#allocation0]]
  $region26: #{tpu_custom_call.1} parent=0
    _
  %s5 = ssub.s32 1, %s3
  %s6 = scalar_select 0, %s5, %s3
  $region1: #{tpu_custom_call.1} parent=0
    #allocation2 [shape = 'u8[8192]{0}', space=vmem, size = 0x2000, scoped, tag = 'input window, operand 0, single buffered']
    #allocation3 [shape = 's32[1]{0}', space=sflag, size = 0x4, scoped, tag = 'scoped memory for tpu_custom_call.1']
    #allocation4 [shape = 's32[1]{0}', space=sflag, size = 0x4, scoped, tag = 'scoped memory for tpu_custom_call.1']
    #allocation5 [shape = 'u8[8192]{0}', space=vmem, size = 0x2000, scoped, tag = 'input window, operand 1, single buffered']
    #allocation6 [shape = 's32[1]{0}', space=sflag, size = 0x4, scoped, tag = 'scoped memory for tpu_custom_call.1']
    #allocation7 [shape = 'u8[512]{0}', space=smem, size = 0x200, scoped, tag = 'output window, operand 0, single buffered']
    %7 = vsyncpa [#allocation3], 0
    %8 = vsyncpa [#allocation6], 0
    %9 = vsyncpa [#allocation4], 0
    // Predicated region
    $region2: #{tpu_custom_call.1} parent=1 // pred_check
      _
    $region3: #{tpu_custom_call.1} parent=1 // pred_check_branch
      %11 = sbr.rel (0) target = $region5
    $region4: #{tpu_custom_call.1} parent=1 // pred_region
      %s13 = ssub.s32 256, 256
      %14 = vsyncadd [#allocation3], %s13
      %s15 = sshll.u32 [#allocation2], 4
      %s16 = int_to_ptr.vmem [resolvable:$true] %s15
      %21 = dma.hbm_to_vmem [thread:$0]  %s0, 256, %s16, [#allocation3], 128, 128, 8
    $region5: #{tpu_custom_call.1} parent=1 // pred_fallthru
      _
    // Predicated region
    $region6: #{tpu_custom_call.1} parent=1 // pred_check
      _
    $region7: #{tpu_custom_call.1} parent=1 // pred_check_branch
      %23 = sbr.rel (0) target = $region9
    $region8: #{tpu_custom_call.1} parent=1 // pred_region
      %s25 = ssub.s32 256, 256
      %26 = vsyncadd [#allocation6], %s25
      %s27 = sshll.u32 [#allocation5], 4
      %s28 = int_to_ptr.vmem [resolvable:$true] %s27
      %33 = dma.hbm_to_vmem [thread:$0]  %s1, 256, %s28, [#allocation6], 128, 128, 8
    $region9: #{tpu_custom_call.1} parent=1 // pred_fallthru
      _
    // Predicated region
    $region10: #{tpu_custom_call.1} parent=1 // pred_check
      _
    $region11: #{tpu_custom_call.1} parent=1 // pred_check_branch
      %35 = sbr.rel (0) target = $region13
    $region12: #{tpu_custom_call.1} parent=1 // pred_region
      %36 = dma.done [#allocation3], 256
    $region13: #{tpu_custom_call.1} parent=1 // pred_fallthru
      _
    // Predicated region
    $region14: #{tpu_custom_call.1} parent=1 // pred_check
      _
    $region15: #{tpu_custom_call.1} parent=1 // pred_check_branch
      %38 = sbr.rel (0) target = $region17
    $region16: #{tpu_custom_call.1} parent=1 // pred_region
      %39 = dma.done [#allocation6], 256
    $region17: #{tpu_custom_call.1} parent=1 // pred_fallthru
      _
    %v40 = vld [vmem:[#allocation2] sm:$0xff]
    %v41 = vld [vmem:[#allocation2 + $0x8] sm:$0xff]
    %v42 = vld [vmem:[#allocation5] sm:$0xff]
    %v43 = vld [vmem:[#allocation5 + $0x8] sm:$0xff]
    %v44 = vand.u32 2147483647, %v40
    %v45 = vand.u32 2147483647, %v41
    %v46 = vsub.f32 0.0, %v44
    %v47 = vsub.f32 0.0, %v45
    %v48 = vmul.f32 %v46, 1.442695
    %v49 = vpow.pop %v48
    %v50 = vmul.f32 %v47, 1.442695
    %v51 = vpow.pop %v50
    %v52 = vmax.f32 %v40, 0.0
    %v53 = vmax.f32 %v41, 0.0
    %v54 = vmul.f32 %v40, %v42
    %v55 = vmul.f32 %v41, %v43
    %v56 = vsub.f32 %v52, %v54
    %v57 = vsub.f32 %v53, %v55
    %v58 = vadd.f32 %v49, 1.0
    %v59 = vlog2.pop %v58
    %v60 = vmul.f32 %v59, 0.6931472
    %v61 = vmul.f32 -0.5, %v49
    %v62 = vadd.f32 %v61, 1.0
    %v63 = vmul.f32 %v62, %v49
    %v64 = vand.u32 2147483647, %v49
    %vm65 = vcmp.lt.f32.partialorder %v64, 0.0004427343
    %v66 = vsel %vm65, %v63, %v60
    %v67 = vadd.f32 %v51, 1.0
    %v68 = vlog2.pop %v67
    %v69 = vmul.f32 %v68, 0.6931472
    %v70 = vmul.f32 -0.5, %v51
    %v71 = vadd.f32 %v70, 1.0
    %v72 = vmul.f32 %v71, %v51
    %v73 = vand.u32 2147483647, %v51
    %vm74 = vcmp.lt.f32.partialorder %v73, 0.0004427343
    %v75 = vsel %vm74, %v72, %v69
    %v76 = vadd.f32 %v56, %v66
    %v77 = vadd.f32 %v57, %v75
    %vm78 = vcmp.ge.f32.partialorder %v40, 0.0
    %vm79 = vcmp.ge.f32.partialorder %v41, 0.0
    %v80 = vsel %vm78, 1.0, %v49
    %v81 = vsel %vm79, 1.0, %v51
    %v82 = vadd.f32 %v49, 1.0
    %v83 = vadd.f32 %v51, 1.0
    %v84 = vrcp.pop %v82
    %v85 = vrcp.pop %v83
    %v86 = vmul.f32 %v80, %v84
    %v87 = vmul.f32 %v81, %v85
    %v88 = vmul.f32 %v86, %v42
    %v89 = vmul.f32 %v87, %v43
    %v90 = vadd.f32 %v86, %v42
    %v91 = vadd.f32 %v87, %v43
    %v92 = vadd.f32 %v76, %v77
    %93 = vadd.xlane.f32.xlu0 %v92
    %v94 = vpop.xlane.xlu0 %93
    %v95 = vrot.slane %v94, 4
    %v96 = vadd.f32 %v94, %v95
    %v97 = vrot.slane %v96, 2
    %v98 = vadd.f32 %v96, %v97
    %v99 = vrot.slane %v98, 1
    %v100 = vadd.f32 %v98, %v99
    %s101 = vtos %v100
    %s102 = smul.f32 %s101, 0.00048828125
    %v103 = vadd.f32 %v88, %v89
    %104 = vadd.xlane.f32.xlu0 %v103
    %v105 = vpop.xlane.xlu0 %104
    %v106 = vrot.slane %v105, 4
    %v107 = vadd.f32 %v105, %v106
    %v108 = vrot.slane %v107, 2
    %v109 = vadd.f32 %v107, %v108
    %v110 = vrot.slane %v109, 1
    %v111 = vadd.f32 %v109, %v110
    %s112 = vtos %v111
    %v113 = vadd.f32 %v90, %v91
    %114 = vadd.xlane.f32.xlu0 %v113
    %v115 = vpop.xlane.xlu0 %114
    %v116 = vrot.slane %v115, 4
    %v117 = vadd.f32 %v115, %v116
    %v118 = vrot.slane %v117, 2
    %v119 = vadd.f32 %v117, %v118
    %v120 = vrot.slane %v119, 1
    %v121 = vadd.f32 %v119, %v120
    %s122 = vtos %v121
    %s123 = smul.f32 %s112, 2.0
    %s124 = sadd.f32 %s123, 1.0
    %s125 = sadd.f32 %s122, 1.0
    %v126 = vstv %s125
    %v127 = vrcp.pop %v126
    %s128 = vtos %v127
    %s129 = smul.f32 %s124, %s128
    %s130 = ssub.f32 1.0, %s129
    %s131 = sadd.f32 %s102, %s130
    %s132 = scalar_lea.smem [#allocation7], 0
    %133 = sst [smem:[%s132]] %s131
    // Predicated region
    $region18: #{tpu_custom_call.1} parent=1 // pred_check
      _
    $region19: #{tpu_custom_call.1} parent=1 // pred_check_branch
      %135 = sbr.rel (0) target = $region21
    $region20: #{tpu_custom_call.1} parent=1 // pred_region
      %s137 = ssub.s32 16, 16
      %138 = vsyncadd [#allocation4], %s137
      %141 = dma.smem_to_hbm [#allocation7], 16, %s2, [#allocation4]
    $region21: #{tpu_custom_call.1} parent=1 // pred_fallthru
      _
    // Predicated region
    $region22: #{tpu_custom_call.1} parent=1 // pred_check
      _
    $region23: #{tpu_custom_call.1} parent=1 // pred_check_branch
      %143 = sbr.rel (0) target = $region25
    $region24: #{tpu_custom_call.1} parent=1 // pred_region
      %144 = dma.done [#allocation4], 16
    $region25: #{tpu_custom_call.1} parent=1 // pred_fallthru
      _
    %145 = sfence
    %146 = vsyncpa [#allocation3], 1
    %147 = vsyncpa [#allocation6], 1
    %148 = vsyncpa [#allocation4], 1

</llo_original>
